<compile_context>
chip_gen: v7x
topology: tpu7x:2x2x1
jax: 0.10.0
libtpu: 0.0.40
codegen_flags: <defaults>
</compile_context>

<pallas_src>
import functools

import jax
import jax.numpy as jnp
import numpy as np
from jax.experimental import pallas as pl
from jax.experimental.pallas import tpu as pltpu  # noqa: F401  (TPU backend)


def _encoder_kernel(col_ref, w_ref, g_ref, b_ref, o_ref, *, eps, inv_count, q):
    # col_ref : (9*Cin, 4*q)   im2col, lanes ordered (window member j, n, ho, wo)
    # w_ref   : (Cout, 9*Cin)  3x3 weights, tap-major columns (kh*3 + kw)*Cin + cin
    # g_ref   : (Cout, 1)      BatchNorm gamma
    # b_ref   : (Cout, 1)      BatchNorm beta
    # o_ref   : (Cout, q)      pooled output, q = N*Ho*Wo (lane-dense)
    ys = jnp.dot(w_ref[...], col_ref[...],
                 preferred_element_type=jnp.float32)          # (Cout, 4*q)

    # Train-mode BatchNorm statistics over (N, H, W) per channel.
    mean = jnp.sum(ys, axis=1, keepdims=True) * inv_count     # (Cout, 1)
    d = ys - mean
    var = jnp.sum(d * d, axis=1, keepdims=True) * inv_count   # biased, like PyTorch
    scale = g_ref[...] * jax.lax.rsqrt(var + eps)
    shift = b_ref[...] - mean * scale
    ya = ys * scale + shift                                   # whole-slab affine

    # MaxPool 2x2: the four window members are the four contiguous q-wide slabs.
    pooled = jnp.maximum(jnp.maximum(ya[:, 0 * q:1 * q], ya[:, 1 * q:2 * q]),
                         jnp.maximum(ya[:, 2 * q:3 * q], ya[:, 3 * q:4 * q]))
    o_ref[...] = jnp.maximum(pooled, 0.0)                     # ReLU, one store


@functools.partial(jax.jit, static_argnames=("eps",))
def encoder_forward(x, w, bias, gamma, beta, eps=1e-5):
    # x: (N, Cin, H, W) NCHW;  w: (Cout, Cin, 3, 3) PyTorch layout.
    N, Cin, H, W = x.shape
    Cout = w.shape[0]
    assert H % 2 == 0 and W % 2 == 0
    Ho, Wo = H // 2, W // 2
    q = N * Ho * Wo
    del bias  # exactly cancelled by the train-mode BatchNorm mean subtraction

    x = x.astype(jnp.float32)
    xp = jnp.pad(x, ((0, 0), (0, 0), (1, 1), (1, 1)))         # conv padding = 1

    # im2col with lanes ordered (pool-window member j=(dh,dw), n, ho, wo):
    # col[(kh*3+kw)*Cin + cin, j*q + n*Ho*Wo + ho*Wo + wo]
    #   = xp[n, cin, 2*ho + dh + kh, 2*wo + dw + kw]
    taps = jnp.stack([xp[:, :, kh:kh + H, kw:kw + W]
                      for kh in range(3) for kw in range(3)], axis=0)  # (9,N,Cin,H,W)
    taps = taps.reshape(9, N, Cin, Ho, 2, Wo, 2)
    col = jnp.transpose(taps, (0, 2, 4, 6, 1, 3, 5)).reshape(9 * Cin, 4 * q)

    # (Cout, Cin, 3, 3) -> (Cout, 9*Cin) with tap-major columns.
    wmat = jnp.transpose(w, (0, 2, 3, 1)).reshape(Cout, 9 * Cin).astype(jnp.float32)
    g2 = gamma.reshape(Cout, 1).astype(jnp.float32)
    b2 = beta.reshape(Cout, 1).astype(jnp.float32)

    out = pl.pallas_call(
        functools.partial(_encoder_kernel, eps=float(eps),
                          inv_count=1.0 / float(N * H * W), q=q),
        out_shape=jax.ShapeDtypeStruct((Cout, q), jnp.float32),
    )(col, wmat, g2, b2)

    # (Cout, N*Ho*Wo) -> (N, Cout, Ho, Wo)
    return jnp.transpose(out.reshape(Cout, N, Ho, Wo), (1, 0, 2, 3))


def _reference(x, w, bias, gamma, beta, eps=1e-5):
    # Pure-JAX reference mirroring the PyTorch module (train-mode BN).
    y = jax.lax.conv_general_dilated(
        x, w, window_strides=(1, 1), padding=((1, 1), (1, 1)),
        dimension_numbers=("NCHW", "OIHW", "NCHW")) + bias[None, :, None, None]
    mean = y.mean(axis=(0, 2, 3), keepdims=True)
    var = y.var(axis=(0, 2, 3), keepdims=True)
    ybn = ((y - mean) / jnp.sqrt(var + eps) * gamma[None, :, None, None]
           + beta[None, :, None, None])
    pooled = jax.lax.reduce_window(ybn, -jnp.inf, jax.lax.max,
                                   (1, 1, 2, 2), (1, 1, 2, 2), "VALID")
    return jnp.maximum(pooled, 0.0)


if __name__ == "__main__":
    in_chan, out_chan = 4, 8
    N, H, W = 2, 16, 16

    key = jax.random.PRNGKey(0)
    kx, kw, kb = jax.random.split(key, 3)
    x = jax.random.normal(kx, (N, in_chan, H, W), jnp.float32)            # NCHW
    w = jax.random.normal(kw, (out_chan, in_chan, 3, 3), jnp.float32) * 0.1
    bias = jax.random.normal(kb, (out_chan,), jnp.float32) * 0.1
    gamma = jnp.ones((out_chan,), jnp.float32)   # BatchNorm2d default init
    beta = jnp.zeros((out_chan,), jnp.float32)

    out = jax.block_until_ready(encoder_forward(x, w, bias, gamma, beta))
    assert out.shape == (N, out_chan, H // 2, W // 2)

    ref = jax.block_until_ready(_reference(x, w, bias, gamma, beta))
    np.testing.assert_allclose(np.asarray(out), np.asarray(ref),
                               atol=2e-3, rtol=2e-3)

    print("KERNEL_OK")
</pallas_src>

<mosaic_0001>
module attributes {stable_mosaic.version = 11 : i64} {
  func.func @_encoder_kernel(%arg0: memref<36x512xf32, #tpu.memory_space<vmem>>, %arg1: memref<8x36xf32, #tpu.memory_space<vmem>>, %arg2: memref<8x1xf32, #tpu.memory_space<vmem>>, %arg3: memref<8x1xf32, #tpu.memory_space<vmem>>, %arg4: memref<8x128xf32, #tpu.memory_space<vmem>>) attributes {dimension_semantics = [], scalar_prefetch = 0 : i64, scratch_operands = 0 : i64, tpu.core_type = #tpu.core_type<tc>} {
    %c0 = arith.constant 0 : index
    %c0_0 = arith.constant 0 : index
    %0 = vector.load %arg1[%c0, %c0_0] : memref<8x36xf32, #tpu.memory_space<vmem>>, vector<8x36xf32>
    %c0_1 = arith.constant 0 : index
    %c0_2 = arith.constant 0 : index
    %1 = vector.load %arg0[%c0_1, %c0_2] : memref<36x512xf32, #tpu.memory_space<vmem>>, vector<36x512xf32>
    %cst = arith.constant dense<0.000000e+00> : vector<8x512xf32>
    %2 = tpu.matmul %0, %1, %cst {dimension_numbers = #tpu.dot_dimension_numbers<[1], [0], [0], [1], [0, 0, 1, 1], [], []>} : vector<8x36xf32>, vector<36x512xf32>, vector<8x512xf32> -> vector<8x512xf32>
    %cst_3 = arith.constant dense<0.000000e+00> : vector<8xf32>
    %3 = vector.multi_reduction <add>, %2, %cst_3 [1] : vector<8x512xf32> to vector<8xf32>
    %4 = vector.shape_cast %3 : vector<8xf32> to vector<8x1xf32>
    %cst_4 = arith.constant 0.001953125 : f32
    %5 = vector.broadcast %cst_4 : f32 to vector<8x1xf32>
    %6 = arith.mulf %4, %5 : vector<8x1xf32>
    %7 = vector.broadcast %6 : vector<8x1xf32> to vector<8x512xf32>
    %8 = arith.subf %2, %7 : vector<8x512xf32>
    %9 = arith.mulf %8, %8 : vector<8x512xf32>
    %cst_5 = arith.constant dense<0.000000e+00> : vector<8xf32>
    %10 = vector.multi_reduction <add>, %9, %cst_5 [1] : vector<8x512xf32> to vector<8xf32>
    %11 = vector.shape_cast %10 : vector<8xf32> to vector<8x1xf32>
    %cst_6 = arith.constant 0.001953125 : f32
    %12 = vector.broadcast %cst_6 : f32 to vector<8x1xf32>
    %13 = arith.mulf %11, %12 : vector<8x1xf32>
    %c0_7 = arith.constant 0 : index
    %c0_8 = arith.constant 0 : index
    %14 = vector.load %arg2[%c0_7, %c0_8] : memref<8x1xf32, #tpu.memory_space<vmem>>, vector<8x1xf32>
    %cst_9 = arith.constant 9.99999974E-6 : f32
    %15 = vector.broadcast %cst_9 : f32 to vector<8x1xf32>
    %16 = arith.addf %13, %15 : vector<8x1xf32>
    %17 = math.rsqrt %16 : vector<8x1xf32>
    %18 = arith.mulf %14, %17 : vector<8x1xf32>
    %c0_10 = arith.constant 0 : index
    %c0_11 = arith.constant 0 : index
    %19 = vector.load %arg3[%c0_10, %c0_11] : memref<8x1xf32, #tpu.memory_space<vmem>>, vector<8x1xf32>
    %20 = arith.mulf %6, %18 : vector<8x1xf32>
    %21 = arith.subf %19, %20 : vector<8x1xf32>
    %22 = vector.broadcast %18 : vector<8x1xf32> to vector<8x512xf32>
    %23 = arith.mulf %2, %22 : vector<8x512xf32>
    %24 = vector.broadcast %21 : vector<8x1xf32> to vector<8x512xf32>
    %25 = arith.addf %23, %24 : vector<8x512xf32>
    %26 = vector.extract_strided_slice %25 {offsets = [0, 0], sizes = [8, 128], strides = [1, 1]} : vector<8x512xf32> to vector<8x128xf32>
    %27 = vector.extract_strided_slice %25 {offsets = [0, 128], sizes = [8, 128], strides = [1, 1]} : vector<8x512xf32> to vector<8x128xf32>
    %28 = arith.maximumf %26, %27 : vector<8x128xf32>
    %29 = vector.extract_strided_slice %25 {offsets = [0, 256], sizes = [8, 128], strides = [1, 1]} : vector<8x512xf32> to vector<8x128xf32>
    %30 = vector.extract_strided_slice %25 {offsets = [0, 384], sizes = [8, 128], strides = [1, 1]} : vector<8x512xf32> to vector<8x128xf32>
    %31 = arith.maximumf %29, %30 : vector<8x128xf32>
    %32 = arith.maximumf %28, %31 : vector<8x128xf32>
    %cst_12 = arith.constant 0.000000e+00 : f32
    %33 = vector.broadcast %cst_12 : f32 to vector<8x128xf32>
    %34 = arith.maximumf %32, %33 : vector<8x128xf32>
    %c0_13 = arith.constant 0 : index
    %c0_14 = arith.constant 0 : index
    %35 = vector.load %arg4[%c0_13, %c0_14] : memref<8x128xf32, #tpu.memory_space<vmem>>, vector<8x128xf32>
    tpu.vector_store %arg4[%c0_13, %c0_14], %34 {strides = array<i32>} : memref<8x128xf32, #tpu.memory_space<vmem>>, vector<8x128xf32>,
    return
  }
}

</mosaic_0001>

<llo_original>
// kernel: encoder_forward.1
$region0: #{encoder_forward.1}
  #allocation0 [shape = 'u32[]', space=smem, size = 0x4, offset = 0x4, fixed_abs, tag = 'smem constant byte address 0x4 - core index']
  #allocation1 [shape = 'u32[144,128]{1,0:T(1,128)}', space=vmem, size = 0x12000, scoped, tag = 'internal scratch']
  %s0 = inlined_call_operand.vmem [shape: f32[36,512], index: 0, kind: input, shape index: {}]
  %s1 = inlined_call_operand.vmem [shape: f32[8,36], index: 1, kind: input, shape index: {}]
  %s2 = inlined_call_operand.vmem [shape: f32[8,1], index: 2, kind: input, shape index: {}]
  %s3 = inlined_call_operand.vmem [shape: f32[8,1], index: 3, kind: input, shape index: {}]
  %s4 = inlined_call_operand.vmem [shape: f32[8,128], index: 4, kind: output, shape index: {}]
  %s5 = sld [smem:[#allocation0]]
  $region26: #{encoder_forward.1} parent=0
    _
  %s7 = ssub.s32 1, %s5
  %s8 = scalar_select 0, %s7, %s5
  // Predicated region
  $region2: #{encoder_forward.1} parent=0 // pred_check
    _
  $region3: #{encoder_forward.1} parent=0 // pred_check_branch
    %10 = sbr.rel (0) target = $region5
  $region4: #{encoder_forward.1} parent=0 // pred_region
    _
  $region5: #{encoder_forward.1} parent=0 // pred_fallthru
    _
  // Predicated region
  $region6: #{encoder_forward.1} parent=0 // pred_check
    _
  $region7: #{encoder_forward.1} parent=0 // pred_check_branch
    %12 = sbr.rel (0) target = $region9
  $region8: #{encoder_forward.1} parent=0 // pred_region
    _
  $region9: #{encoder_forward.1} parent=0 // pred_fallthru
    _
  // Predicated region
  $region10: #{encoder_forward.1} parent=0 // pred_check
    _
  $region11: #{encoder_forward.1} parent=0 // pred_check_branch
    %14 = sbr.rel (0) target = $region13
  $region12: #{encoder_forward.1} parent=0 // pred_region
    _
  $region13: #{encoder_forward.1} parent=0 // pred_fallthru
    _
  // Predicated region
  $region14: #{encoder_forward.1} parent=0 // pred_check
    _
  $region15: #{encoder_forward.1} parent=0 // pred_check_branch
    %16 = sbr.rel (0) target = $region17
  $region16: #{encoder_forward.1} parent=0 // pred_region
    _
  $region17: #{encoder_forward.1} parent=0 // pred_fallthru
    _
  %v17 = vld [vmem:[%s1] sm:$0xff]
  %v18 = vld [vmem:[%s0] sm:$0xff]
  %v19 = vld [vmem:[%s0 + $0x8] sm:$0xff]
  %v20 = vld [vmem:[%s0 + $0x10] sm:$0xff]
  %v21 = vld [vmem:[%s0 + $0x18] sm:$0xff]
  %v22 = vld [vmem:[%s0 + $0x20] sm:$0xff]
  %v23 = vld [vmem:[%s0 + $0x28] sm:$0xff]
  %v24 = vld [vmem:[%s0 + $0x30] sm:$0xff]
  %v25 = vld [vmem:[%s0 + $0x38] sm:$0xff]
  %v26 = vld [vmem:[%s0 + $0x40] sm:$0xff]
  %v27 = vld [vmem:[%s0 + $0x48] sm:$0xff]
  %v28 = vld [vmem:[%s0 + $0x50] sm:$0xff]
  %v29 = vld [vmem:[%s0 + $0x58] sm:$0xff]
  %v30 = vld [vmem:[%s0 + $0x60] sm:$0xff]
  %v31 = vld [vmem:[%s0 + $0x68] sm:$0xff]
  %v32 = vld [vmem:[%s0 + $0x70] sm:$0xff]
  %v33 = vld [vmem:[%s0 + $0x78] sm:$0xff]
  %v34 = vld [vmem:[%s0 + $0x80] sm:$0xf]
  %v35 = vld [vmem:[%s0 + $0x88] sm:$0xf]
  %v36 = vld [vmem:[%s0 + $0x90] sm:$0xf]
  %v37 = vld [vmem:[%s0 + $0x98] sm:$0xf]
  %vm38 = vcmask 293888
  %v40 = vsel %vm38, %v17, 0
  %vm42 = vcmask 1043456
  %v44 = vsel %vm42, %v34, 0
  %v47 = vsel %vm42, %v35, 0
  %v50 = vsel %vm42, %v36, 0
  %v53 = vsel %vm42, %v37, 0
  %55 = vmatprep.subr.mxu0 %v19
  %56 = vmatpush1.msra.mxu0 %v18
  %57 = vmatprep.subr.mxu0 %v23
  %58 = vmatpush1.msra.mxu0 %v22
  %59 = vmatprep.subr.mxu0 %v27
  %60 = vmatpush1.msra.mxu0 %v26
  %61 = vmatprep.subr.mxu0 %v31
  %62 = vmatpush1.msra.mxu0 %v30
  %63 = vmatprep.subr.mxu0 %v47
  %64 = vmatpush1.msra.mxu0 %v44
  %65 = vmatprep.subr.mxu0 0.0
  %66 = vmatpush1.msra.mxu0 0.0
  %67 = vmatprep.subr.mxu0 0.0
  %68 = vmatpush1.msra.mxu0 0.0
  %69 = vmatprep.subr.mxu0 0.0
  %70 = vmatpush1.msra.mxu0 0.0
  %71 = vmatprep.subr.mxu0 0.0
  %72 = vmatpush1.msra.mxu0 0.0
  %73 = vmatprep.subr.mxu0 0.0
  %74 = vmatpush1.msra.mxu0 0.0
  %75 = vmatprep.subr.mxu0 0.0
  %76 = vmatpush1.msra.mxu0 0.0
  %77 = vmatprep.subr.mxu0 0.0
  %78 = vmatpush1.msra.mxu0 0.0
  %79 = vmatprep.subr.mxu0 0.0
  %80 = vmatpush1.msra.mxu0 0.0
  %81 = vmatprep.subr.mxu0 0.0
  %82 = vmatpush1.msra.mxu0 0.0
  %83 = vmatprep.subr.mxu0 0.0
  %84 = vmatpush1.msra.mxu0 0.0
  %85 = vmatprep.subr.mxu0 0.0
  %86 = vmatpush1.msra.mxu0 0.0
  %87 = vmatprep.subr.mxu0 0.0
  %88 = vmatpush1.msra.mxu0 0.0
  %89 = vmatprep.subr.mxu0 0.0
  %90 = vmatpush1.msra.mxu0 0.0
  %91 = vmatprep.subr.mxu0 0.0
  %92 = vmatpush1.msra.mxu0 0.0
  %93 = vmatprep.subr.mxu0 0.0
  %94 = vmatpush1.msra.mxu0 0.0
  %95 = vmatprep.subr.mxu0 0.0
  %96 = vmatpush1.msra.mxu0 0.0
  %97 = vmatprep.subr.mxu0 0.0
  %98 = vmatpush1.msra.mxu0 0.0
  %99 = vmatprep.subr.mxu0 0.0
  %100 = vmatpush1.msra.mxu0 0.0
  %101 = vmatprep.subr.mxu0 0.0
  %102 = vmatpush1.msra.mxu0 0.0
  %103 = vmatprep.subr.mxu0 0.0
  %104 = vmatpush1.msra.mxu0 0.0
  %105 = vmatprep.subr.mxu0 0.0
  %106 = vmatpush1.msra.mxu0 0.0
  %107 = vmatprep.subr.mxu0 0.0
  %108 = vmatpush1.msra.mxu0 0.0
  %109 = vmatprep.subr.mxu0 0.0
  %110 = vmatpush1.msra.mxu0 0.0
  %111 = vmatprep.subr.mxu0 0.0
  %112 = vmatpush1.msra.mxu0 0.0
  %113 = vmatprep.subr.mxu0 0.0
  %114 = vmatpush1.msra.mxu0 0.0
  %115 = vmatprep.subr.mxu0 0.0
  %116 = vmatpush1.msra.mxu0 0.0
  %117 = vmatprep.subr.mxu0 0.0
  %118 = vmatpush1.msra.mxu0 0.0
  %119 = vmatprep.mubr.f32.mxu0 0.0
  %120 = vmatmul.mubr.f32.gmra.mrb[0].mxu0 %v40
  %v121 = vpop.f32.mrb[0].mxu0
  %v122 = vadd.f32 0.0, %v121
  %v123 = vpop.f32.mrb[0].mxu0
  %v124 = vadd.f32 0.0, %v123
  %125 = vdwg.mxu0
  %126 = vmatprep.subr.mxu0 %v21
  %127 = vmatpush1.msra.mxu0 %v20
  %128 = vmatprep.subr.mxu0 %v25
  %129 = vmatpush1.msra.mxu0 %v24
  %130 = vmatprep.subr.mxu0 %v29
  %131 = vmatpush1.msra.mxu0 %v28
  %132 = vmatprep.subr.mxu0 %v33
  %133 = vmatpush1.msra.mxu0 %v32
  %134 = vmatprep.subr.mxu0 %v53
  %135 = vmatpush1.msra.mxu0 %v50
  %136 = vmatprep.subr.mxu0 0.0
  %137 = vmatpush1.msra.mxu0 0.0
  %138 = vmatprep.subr.mxu0 0.0
  %139 = vmatpush1.msra.mxu0 0.0
  %140 = vmatprep.subr.mxu0 0.0
  %141 = vmatpush1.msra.mxu0 0.0
  %142 = vmatprep.subr.mxu0 0.0
  %143 = vmatpush1.msra.mxu0 0.0
  %144 = vmatprep.subr.mxu0 0.0
  %145 = vmatpush1.msra.mxu0 0.0
  %146 = vmatprep.subr.mxu0 0.0
  %147 = vmatpush1.msra.mxu0 0.0
  %148 = vmatprep.subr.mxu0 0.0
  %149 = vmatpush1.msra.mxu0 0.0
  %150 = vmatprep.subr.mxu0 0.0
  %151 = vmatpush1.msra.mxu0 0.0
  %152 = vmatprep.subr.mxu0 0.0
  %153 = vmatpush1.msra.mxu0 0.0
  %154 = vmatprep.subr.mxu0 0.0
  %155 = vmatpush1.msra.mxu0 0.0
  %156 = vmatprep.subr.mxu0 0.0
  %157 = vmatpush1.msra.mxu0 0.0
  %158 = vmatprep.subr.mxu0 0.0
  %159 = vmatpush1.msra.mxu0 0.0
  %160 = vmatprep.subr.mxu0 0.0
  %161 = vmatpush1.msra.mxu0 0.0
  %162 = vmatprep.subr.mxu0 0.0
  %163 = vmatpush1.msra.mxu0 0.0
  %164 = vmatprep.subr.mxu0 0.0
  %165 = vmatpush1.msra.mxu0 0.0
  %166 = vmatprep.subr.mxu0 0.0
  %167 = vmatpush1.msra.mxu0 0.0
  %168 = vmatprep.subr.mxu0 0.0
  %169 = vmatpush1.msra.mxu0 0.0
  %170 = vmatprep.subr.mxu0 0.0
  %171 = vmatpush1.msra.mxu0 0.0
  %172 = vmatprep.subr.mxu0 0.0
  %173 = vmatpush1.msra.mxu0 0.0
  %174 = vmatprep.subr.mxu0 0.0
  %175 = vmatpush1.msra.mxu0 0.0
  %176 = vmatprep.subr.mxu0 0.0
  %177 = vmatpush1.msra.mxu0 0.0
  %178 = vmatprep.subr.mxu0 0.0
  %179 = vmatpush1.msra.mxu0 0.0
  %180 = vmatprep.subr.mxu0 0.0
  %181 = vmatpush1.msra.mxu0 0.0
  %182 = vmatprep.subr.mxu0 0.0
  %183 = vmatpush1.msra.mxu0 0.0
  %184 = vmatprep.subr.mxu0 0.0
  %185 = vmatpush1.msra.mxu0 0.0
  %186 = vmatprep.subr.mxu0 0.0
  %187 = vmatpush1.msra.mxu0 0.0
  %188 = vmatprep.subr.mxu0 0.0
  %189 = vmatpush1.msra.mxu0 0.0
  %190 = vmatprep.mubr.f32.mxu0 0.0
  %191 = vmatmul.mubr.f32.gmra.mrb[0].mxu0 %v40
  %v192 = vpop.f32.mrb[0].mxu0
  %v193 = vadd.f32 0.0, %v192
  %v194 = vpop.f32.mrb[0].mxu0
  %v195 = vadd.f32 0.0, %v194
  %196 = vdwg.mxu0
  %v197 = vadd.f32 %v122, %v124
  %v198 = vadd.f32 %v197, %v193
  %v199 = vadd.f32 %v198, %v195
  %200 = vadd.xlane.f32.xlu0 %v199
  %v201 = vpop.xlane.xlu0 %200
  %v202 = vmul.f32 %v201, 0.001953125
  %v203 = vsub.f32 %v122, %v202
  %v204 = vsub.f32 %v124, %v202
  %v205 = vsub.f32 %v193, %v202
  %v206 = vsub.f32 %v195, %v202
  %v207 = vmul.f32 %v203, %v203
  %v208 = vmul.f32 %v204, %v204
  %v209 = vmul.f32 %v205, %v205
  %v210 = vmul.f32 %v206, %v206
  %v211 = vadd.f32 %v207, %v208
  %v212 = vadd.f32 %v211, %v209
  %v213 = vadd.f32 %v212, %v210
  %214 = vadd.xlane.f32.xlu0 %v213
  %v215 = vpop.xlane.xlu0 %214
  %v216 = vmul.f32 %v215, 0.001953125
  %v217 = vld [vmem:[%s2] sm:$0xff]
  %v218 = vadd.f32 %v216, 1e-05
  %v219 = vrsqrt.pop %v218
  %v220 = vmul.f32 %v217, %v219
  %v221 = vld [vmem:[%s3] sm:$0xff]
  %v222 = vmul.f32 %v202, %v220
  %v223 = vsub.f32 %v221, %v222
  %225 = vset.pattern.permute.xlu0 0
  %226 = vperm.xlu0 %225, %v220
  %v227 = vpop.permute.xlu0 %226
  %v229 = vmul.f32 %v122, %v227
  %v230 = vmul.f32 %v124, %v227
  %v231 = vmul.f32 %v193, %v227
  %v232 = vmul.f32 %v195, %v227
  %234 = vset.pattern.permute.xlu0 0
  %235 = vperm.xlu0 %234, %v223
  %v236 = vpop.permute.xlu0 %235
  %v238 = vadd.f32 %v229, %v236
  %v239 = vadd.f32 %v230, %v236
  %v240 = vadd.f32 %v231, %v236
  %v241 = vadd.f32 %v232, %v236
  %v242 = vmax.f32 %v238, %v239
  %v243 = vmax.f32 %v240, %v241
  %v244 = vmax.f32 %v242, %v243
  %v245 = vmax.f32 %v244, 0.0
  %246 = vst [vmem:[%s4] sm:$0xff] %v245
  // Predicated region
  $region18: #{encoder_forward.1} parent=0 // pred_check
    _
  $region19: #{encoder_forward.1} parent=0 // pred_check_branch
    %248 = sbr.rel (0) target = $region21
  $region20: #{encoder_forward.1} parent=0 // pred_region
    _
  $region21: #{encoder_forward.1} parent=0 // pred_fallthru
    _
  // Predicated region
  $region22: #{encoder_forward.1} parent=0 // pred_check
    _
  $region23: #{encoder_forward.1} parent=0 // pred_check_branch
    %250 = sbr.rel (0) target = $region25
  $region24: #{encoder_forward.1} parent=0 // pred_region
    _
  $region25: #{encoder_forward.1} parent=0 // pred_fallthru
    _

</llo_original>
